<compile_context>
chip_gen: v7x
topology: tpu7x:2x2x1
jax: 0.10.0
libtpu: 0.0.40
codegen_flags: <defaults>
</compile_context>

<pallas_src>
import functools

import jax
import jax.numpy as jnp
from jax.experimental import pallas as pl
from jax.experimental.pallas import tpu as pltpu

NUM_LAYERS = 5      # NeuralUnit defaults
HIDDEN_SIZE = 128
OUTPUT_SIZE = 32
INPUT_DIM = 16      # dim_dict[node_type] for the synthetic node type
BATCH = 8

_SINGLE_TILE_MAX = 512   # one tile (grid == 1) up to this many rows
_TB_MAX = 1024           # max rows per grid step for larger batches


def _round_up(n, m):
    return (n + m - 1) // m * m


def _pick_tb(batch):
    """Rows per batch tile.

    Small batches: one block equal to the full array (always layout-legal).
    Large batches: tiles <= _TB_MAX, multiple of 16, chosen so the grid length
    is even (balanced megacore split on v7x; harmless on v5e/v6e)."""
    if batch <= _SINGLE_TILE_MAX:
        return batch
    n_pairs = -(-batch // (2 * _TB_MAX))               # ceil
    return _round_up(-(-batch // (2 * n_pairs)), 16)   # ceil then round to 16


def _mlp_kernel(x_ref, w_first_ref, *rest, num_mid, hidden, out_dim):
    """Fused MLP on one (TB, input_dim) activation tile; weights stay in VMEM."""
    if num_mid > 0:
        w_mid_ref, w_last_ref, b_ref, out_ref = rest
    else:
        w_last_ref, b_ref, out_ref = rest
    act_dtype = w_first_ref.dtype

    # Layer 0: (TB, in_dim) @ (in_dim, hidden), f32 accumulation on the MXU.
    x = x_ref[...].astype(act_dtype)
    h = jnp.dot(x, w_first_ref[...], preferred_element_type=jnp.float32)
    h = jnp.maximum(h + b_ref[pl.ds(0, 1), :hidden], 0.0)

    # Middle layers: stacked (num_mid, hidden, hidden) weights.
    for l in range(num_mid):
        h = jnp.dot(h.astype(act_dtype), w_mid_ref[l],
                    preferred_element_type=jnp.float32)
        h = jnp.maximum(h + b_ref[pl.ds(l + 1, 1), :hidden], 0.0)

    # Last layer: (hidden, out_dim); lane width == output_size, no padding.
    h = jnp.dot(h.astype(act_dtype), w_last_ref[...],
                preferred_element_type=jnp.float32)
    h = jnp.maximum(h + b_ref[pl.ds(num_mid + 1, 1), :out_dim], 0.0)

    out_ref[...] = h.astype(out_ref.dtype)


def init_params(key, input_dim, hidden_size, output_size, num_layers):
    """Xavier-uniform weights (matches nn.init.xavier_uniform_), torch-default
    uniform(-1/sqrt(fan_in), 1/sqrt(fan_in)) biases.  Weights stored (in, out)
    so the kernel computes x @ W + b (== torch's x @ W.T + b)."""
    dims = [input_dim] + [hidden_size] * (num_layers - 1) + [output_size]
    weights, biases = [], []
    for l in range(num_layers):
        fan_in, fan_out = dims[l], dims[l + 1]
        key, wkey, bkey = jax.random.split(key, 3)
        w_limit = (6.0 / (fan_in + fan_out)) ** 0.5
        w = jax.random.uniform(wkey, (fan_in, fan_out), jnp.float32,
                               minval=-w_limit, maxval=w_limit)
        b_limit = 1.0 / (fan_in ** 0.5)
        b = jax.random.uniform(bkey, (fan_out,), jnp.float32,
                               minval=-b_limit, maxval=b_limit)
        weights.append(w)
        biases.append(b)
    return weights, biases


def pack_params(weights, biases, param_dtype=jnp.bfloat16):
    """Stack hidden layers, pack biases, cast weights to bf16 (MXU feed)."""
    num_layers = len(weights)
    assert num_layers >= 2
    input_dim, hidden = weights[0].shape
    output_size = weights[-1].shape[1]
    assert hidden % 128 == 0, "hidden_size should be a multiple of 128 lanes"
    num_mid = num_layers - 2

    w_first = weights[0].astype(param_dtype)                    # (in, hidden)
    w_mid = (jnp.stack(weights[1:-1]).astype(param_dtype)
             if num_mid > 0 else None)                          # (L-2, H, H)
    w_last = weights[-1].astype(param_dtype)                    # (hidden, out)

    width = max(hidden, output_size)
    b_packed = jnp.zeros((num_layers, width), jnp.float32)
    for l in range(num_layers - 1):
        b_packed = b_packed.at[l, :hidden].set(biases[l])
    b_packed = b_packed.at[num_layers - 1, :output_size].set(biases[-1])

    return dict(w_first=w_first, w_mid=w_mid, w_last=w_last, b=b_packed,
                input_dim=input_dim, output_size=output_size,
                hidden=hidden, num_mid=num_mid)


def neural_unit_forward(x, params):
    """x: (B, input_dim) f32  ->  (B, output_size) f32."""
    w_first, w_mid = params["w_first"], params["w_mid"]
    w_last, b = params["w_last"], params["b"]
    input_dim = params["input_dim"]
    output_size = params["output_size"]
    hidden = params["hidden"]
    num_mid = params["num_mid"]

    B = x.shape[0]
    assert x.shape[1] == input_dim

    TB = _pick_tb(B)
    grid = (pl.cdiv(B, TB),)

    in_specs = [
        pl.BlockSpec((TB, input_dim), lambda i: (i, 0)),   # streamed x tile
        pl.BlockSpec(w_first.shape, lambda i: (0, 0)),     # VMEM-resident
    ]
    args = [x, w_first]
    if num_mid > 0:
        in_specs.append(pl.BlockSpec(w_mid.shape, lambda i: (0, 0, 0)))
        args.append(w_mid)
    in_specs += [
        pl.BlockSpec(w_last.shape, lambda i: (0, 0)),      # VMEM-resident
        pl.BlockSpec(b.shape, lambda i: (0, 0)),           # VMEM-resident
    ]
    args += [w_last, b]

    kernel = functools.partial(_mlp_kernel, num_mid=num_mid,
                               hidden=hidden, out_dim=output_size)

    return pl.pallas_call(
        kernel,
        out_shape=jax.ShapeDtypeStruct((B, output_size), jnp.float32),
        grid_spec=pltpu.PrefetchScalarGridSpec(
            num_scalar_prefetch=0,
            grid=grid,
            in_specs=in_specs,
            out_specs=pl.BlockSpec((TB, output_size), lambda i: (i, 0)),
        ),
        compiler_params=pltpu.CompilerParams(
            # Batch axis is embarrassingly parallel -> megacore split on v7x.
            dimension_semantics=("parallel",)),
    )(*args)


def reference_forward(x, params):
    """Pure-JAX reference mirroring the kernel's precision (bf16 x bf16 -> f32).
    Note: this checks consistency with the kernel's bf16 weights, not the f32
    PyTorch module (bf16 quantization error is inherent to the param dtype)."""
    w_first, w_mid = params["w_first"], params["w_mid"]
    w_last, b = params["w_last"], params["b"]
    output_size = params["output_size"]
    hidden = params["hidden"]
    num_mid = params["num_mid"]
    act_dtype = w_first.dtype

    h = jnp.dot(x.astype(act_dtype), w_first, preferred_element_type=jnp.float32)
    h = jnp.maximum(h + b[0:1, :hidden], 0.0)
    for l in range(num_mid):
        h = jnp.dot(h.astype(act_dtype), w_mid[l],
                    preferred_element_type=jnp.float32)
        h = jnp.maximum(h + b[l + 1:l + 2, :hidden], 0.0)
    h = jnp.dot(h.astype(act_dtype), w_last, preferred_element_type=jnp.float32)
    h = jnp.maximum(h + b[num_mid + 1:num_mid + 2, :output_size], 0.0)
    return h


if __name__ == "__main__":
    key = jax.random.PRNGKey(0)
    key, xkey, xkey2 = jax.random.split(key, 3)

    weights, biases = init_params(key, INPUT_DIM, HIDDEN_SIZE,
                                  OUTPUT_SIZE, NUM_LAYERS)
    params = pack_params(weights, biases, param_dtype=jnp.bfloat16)

    # Small, module-consistent batch (one NeuralUnit call) -> single full tile.
    x = jax.random.normal(xkey, (BATCH, INPUT_DIM), jnp.float32)
    out = jax.block_until_ready(neural_unit_forward(x, params))
    assert out.shape == (BATCH, OUTPUT_SIZE)
    ref = reference_forward(x, params)
    assert jnp.allclose(out, ref, atol=1e-3, rtol=1e-3), \
        float(jnp.max(jnp.abs(out - ref)))

    # Larger, non-multiple-of-tile batch: exercises the even 2-step grid and a
    # partial final block (600 rows -> tiles of 304, no wrapper padding).
    x2 = jax.random.normal(xkey2, (600, INPUT_DIM), jnp.float32)
    out2 = jax.block_until_ready(neural_unit_forward(x2, params))
    ref2 = reference_forward(x2, params)
    assert out2.shape == (600, OUTPUT_SIZE)
    assert jnp.allclose(out2, ref2, atol=1e-3, rtol=1e-3), \
        float(jnp.max(jnp.abs(out2 - ref2)))

    print("KERNEL_OK")
</pallas_src>

<mosaic_0001>
module attributes {stable_mosaic.version = 11 : i64} {
  func.func @_mlp_kernel(%arg0: i32, %arg1: memref<8x16xf32, #tpu.memory_space<vmem>>, %arg2: memref<16x128xbf16, #tpu.memory_space<vmem>>, %arg3: memref<3x128x128xbf16, #tpu.memory_space<vmem>>, %arg4: memref<128x32xbf16, #tpu.memory_space<vmem>>, %arg5: memref<5x128xf32, #tpu.memory_space<vmem>>, %arg6: memref<8x32xf32, #tpu.memory_space<vmem>>) attributes {dimension_semantics = [#tpu.dimension_semantics<parallel>], iteration_bounds = array<i64: 1>, scalar_prefetch = 0 : i64, scratch_operands = 0 : i64, tpu.core_type = #tpu.core_type<tc>, window_params = [{transform_indices = @transform_0, window_bounds = array<i64: 8, 16>}, {pipeline_mode = #tpu.pipeline_mode<synchronous>, transform_indices = @transform_1, window_bounds = array<i64: 16, 128>}, {pipeline_mode = #tpu.pipeline_mode<synchronous>, transform_indices = @transform_2, window_bounds = array<i64: 3, 128, 128>}, {pipeline_mode = #tpu.pipeline_mode<synchronous>, transform_indices = @transform_3, window_bounds = array<i64: 128, 32>}, {pipeline_mode = #tpu.pipeline_mode<synchronous>, transform_indices = @transform_4, window_bounds = array<i64: 5, 128>}, {transform_indices = @transform_5, window_bounds = array<i64: 8, 32>}]} {
    %c0 = arith.constant 0 : index
    %c0_0 = arith.constant 0 : index
    %0 = vector.load %arg1[%c0, %c0_0] : memref<8x16xf32, #tpu.memory_space<vmem>>, vector<8x16xf32>
    %1 = arith.truncf %0 : vector<8x16xf32> to vector<8x16xbf16>
    %c0_1 = arith.constant 0 : index
    %c0_2 = arith.constant 0 : index
    %2 = vector.load %arg2[%c0_1, %c0_2] : memref<16x128xbf16, #tpu.memory_space<vmem>>, vector<16x128xbf16>
    %cst = arith.constant dense<0.000000e+00> : vector<8x128xf32>
    %3 = tpu.matmul %1, %2, %cst {dimension_numbers = #tpu.dot_dimension_numbers<[1], [0], [0], [1], [0, 0, 1, 1], [], []>} : vector<8x16xbf16>, vector<16x128xbf16>, vector<8x128xf32> -> vector<8x128xf32>
    %c0_3 = arith.constant 0 : index
    %c0_4 = arith.constant 0 : index
    %4 = vector.load %arg5[%c0_3, %c0_4] : memref<5x128xf32, #tpu.memory_space<vmem>>, vector<1x128xf32>
    %5 = vector.broadcast %4 : vector<1x128xf32> to vector<8x128xf32>
    %6 = arith.addf %3, %5 : vector<8x128xf32>
    %cst_5 = arith.constant 0.000000e+00 : f32
    %7 = vector.broadcast %cst_5 : f32 to vector<8x128xf32>
    %8 = arith.maximumf %6, %7 : vector<8x128xf32>
    %9 = arith.truncf %8 : vector<8x128xf32> to vector<8x128xbf16>
    %c0_6 = arith.constant 0 : index
    %c0_7 = arith.constant 0 : index
    %c0_8 = arith.constant 0 : index
    %10 = vector.load %arg3[%c0_6, %c0_7, %c0_8] : memref<3x128x128xbf16, #tpu.memory_space<vmem>>, vector<1x128x128xbf16>
    %11 = vector.shape_cast %10 : vector<1x128x128xbf16> to vector<128x128xbf16>
    %cst_9 = arith.constant dense<0.000000e+00> : vector<8x128xf32>
    %12 = tpu.matmul %9, %11, %cst_9 {dimension_numbers = #tpu.dot_dimension_numbers<[1], [0], [0], [1], [0, 0, 1, 1], [], []>} : vector<8x128xbf16>, vector<128x128xbf16>, vector<8x128xf32> -> vector<8x128xf32>
    %c1 = arith.constant 1 : index
    %c0_10 = arith.constant 0 : index
    %13 = vector.load %arg5[%c1, %c0_10] : memref<5x128xf32, #tpu.memory_space<vmem>>, vector<1x128xf32>
    %14 = vector.broadcast %13 : vector<1x128xf32> to vector<8x128xf32>
    %15 = arith.addf %12, %14 : vector<8x128xf32>
    %cst_11 = arith.constant 0.000000e+00 : f32
    %16 = vector.broadcast %cst_11 : f32 to vector<8x128xf32>
    %17 = arith.maximumf %15, %16 : vector<8x128xf32>
    %18 = arith.truncf %17 : vector<8x128xf32> to vector<8x128xbf16>
    %c1_12 = arith.constant 1 : index
    %c0_13 = arith.constant 0 : index
    %c0_14 = arith.constant 0 : index
    %19 = vector.load %arg3[%c1_12, %c0_13, %c0_14] : memref<3x128x128xbf16, #tpu.memory_space<vmem>>, vector<1x128x128xbf16>
    %20 = vector.shape_cast %19 : vector<1x128x128xbf16> to vector<128x128xbf16>
    %cst_15 = arith.constant dense<0.000000e+00> : vector<8x128xf32>
    %21 = tpu.matmul %18, %20, %cst_15 {dimension_numbers = #tpu.dot_dimension_numbers<[1], [0], [0], [1], [0, 0, 1, 1], [], []>} : vector<8x128xbf16>, vector<128x128xbf16>, vector<8x128xf32> -> vector<8x128xf32>
    %c2 = arith.constant 2 : index
    %c0_16 = arith.constant 0 : index
    %22 = vector.load %arg5[%c2, %c0_16] : memref<5x128xf32, #tpu.memory_space<vmem>>, vector<1x128xf32>
    %23 = vector.broadcast %22 : vector<1x128xf32> to vector<8x128xf32>
    %24 = arith.addf %21, %23 : vector<8x128xf32>
    %cst_17 = arith.constant 0.000000e+00 : f32
    %25 = vector.broadcast %cst_17 : f32 to vector<8x128xf32>
    %26 = arith.maximumf %24, %25 : vector<8x128xf32>
    %27 = arith.truncf %26 : vector<8x128xf32> to vector<8x128xbf16>
    %c2_18 = arith.constant 2 : index
    %c0_19 = arith.constant 0 : index
    %c0_20 = arith.constant 0 : index
    %28 = vector.load %arg3[%c2_18, %c0_19, %c0_20] : memref<3x128x128xbf16, #tpu.memory_space<vmem>>, vector<1x128x128xbf16>
    %29 = vector.shape_cast %28 : vector<1x128x128xbf16> to vector<128x128xbf16>
    %cst_21 = arith.constant dense<0.000000e+00> : vector<8x128xf32>
    %30 = tpu.matmul %27, %29, %cst_21 {dimension_numbers = #tpu.dot_dimension_numbers<[1], [0], [0], [1], [0, 0, 1, 1], [], []>} : vector<8x128xbf16>, vector<128x128xbf16>, vector<8x128xf32> -> vector<8x128xf32>
    %c3 = arith.constant 3 : index
    %c0_22 = arith.constant 0 : index
    %31 = vector.load %arg5[%c3, %c0_22] : memref<5x128xf32, #tpu.memory_space<vmem>>, vector<1x128xf32>
    %32 = vector.broadcast %31 : vector<1x128xf32> to vector<8x128xf32>
    %33 = arith.addf %30, %32 : vector<8x128xf32>
    %cst_23 = arith.constant 0.000000e+00 : f32
    %34 = vector.broadcast %cst_23 : f32 to vector<8x128xf32>
    %35 = arith.maximumf %33, %34 : vector<8x128xf32>
    %36 = arith.truncf %35 : vector<8x128xf32> to vector<8x128xbf16>
    %c0_24 = arith.constant 0 : index
    %c0_25 = arith.constant 0 : index
    %37 = vector.load %arg4[%c0_24, %c0_25] : memref<128x32xbf16, #tpu.memory_space<vmem>>, vector<128x32xbf16>
    %cst_26 = arith.constant dense<0.000000e+00> : vector<8x32xf32>
    %38 = tpu.matmul %36, %37, %cst_26 {dimension_numbers = #tpu.dot_dimension_numbers<[1], [0], [0], [1], [0, 0, 1, 1], [], []>} : vector<8x128xbf16>, vector<128x32xbf16>, vector<8x32xf32> -> vector<8x32xf32>
    %c4 = arith.constant 4 : index
    %c0_27 = arith.constant 0 : index
    %39 = vector.load %arg5[%c4, %c0_27] : memref<5x128xf32, #tpu.memory_space<vmem>>, vector<1x32xf32>
    %40 = vector.broadcast %39 : vector<1x32xf32> to vector<8x32xf32>
    %41 = arith.addf %38, %40 : vector<8x32xf32>
    %cst_28 = arith.constant 0.000000e+00 : f32
    %42 = vector.broadcast %cst_28 : f32 to vector<8x32xf32>
    %43 = arith.maximumf %41, %42 : vector<8x32xf32>
    %c0_29 = arith.constant 0 : index
    %c0_30 = arith.constant 0 : index
    %44 = vector.load %arg6[%c0_29, %c0_30] : memref<8x32xf32, #tpu.memory_space<vmem>>, vector<8x32xf32>
    tpu.vector_store %arg6[%c0_29, %c0_30], %43 {strides = array<i32>} : memref<8x32xf32, #tpu.memory_space<vmem>>, vector<8x32xf32>,
    return
  }
  func.func @transform_0(%arg0: i32) -> (i32, i32) {
    %c0_i32 = arith.constant 0 : i32
    %c0_i32_0 = arith.constant 0 : i32
    return %arg0, %c0_i32 : i32, i32
  }
  func.func @transform_1(%arg0: i32) -> (i32, i32) {
    %c0_i32 = arith.constant 0 : i32
    %c0_i32_0 = arith.constant 0 : i32
    %c0_i32_1 = arith.constant 0 : i32
    return %c0_i32, %c0_i32_0 : i32, i32
  }
  func.func @transform_2(%arg0: i32) -> (i32, i32, i32) {
    %c0_i32 = arith.constant 0 : i32
    %c0_i32_0 = arith.constant 0 : i32
    %c0_i32_1 = arith.constant 0 : i32
    %c0_i32_2 = arith.constant 0 : i32
    return %c0_i32, %c0_i32_0, %c0_i32_1 : i32, i32, i32
  }
  func.func @transform_3(%arg0: i32) -> (i32, i32) {
    %c0_i32 = arith.constant 0 : i32
    %c0_i32_0 = arith.constant 0 : i32
    %c0_i32_1 = arith.constant 0 : i32
    return %c0_i32, %c0_i32_0 : i32, i32
  }
  func.func @transform_4(%arg0: i32) -> (i32, i32) {
    %c0_i32 = arith.constant 0 : i32
    %c0_i32_0 = arith.constant 0 : i32
    %c0_i32_1 = arith.constant 0 : i32
    return %c0_i32, %c0_i32_0 : i32, i32
  }
  func.func @transform_5(%arg0: i32) -> (i32, i32) {
    %c0_i32 = arith.constant 0 : i32
    %c0_i32_0 = arith.constant 0 : i32
    return %arg0, %c0_i32 : i32, i32
  }
}

</mosaic_0001>

<llo_original>
// kernel: tpu_custom_call.1
$region0: #{tpu_custom_call.1}
  #allocation0 [shape = 'u32[]', space=smem, size = 0x4, offset = 0x4, fixed_abs, tag = 'smem constant byte address 0x4 - core index']
  #allocation1 [shape = 'u32[144,128]{1,0:T(1,128)}', space=vmem, size = 0x12000, scoped, tag = 'internal scratch']
  %s0 = inlined_call_operand.vmem [shape: f32[8,16], index: 0, kind: input, shape index: {}]
  %s1 = inlined_call_operand.vmem [shape: bf16[16,128], index: 1, kind: input, shape index: {}]
  %s2 = inlined_call_operand.hbm [shape: bf16[3,128,128], index: 2, kind: input, shape index: {}]
  %s3 = inlined_call_operand.vmem [shape: bf16[128,32], index: 3, kind: input, shape index: {}]
  %s4 = inlined_call_operand.vmem [shape: f32[5,128], index: 4, kind: input, shape index: {}]
  %s5 = inlined_call_operand.hbm [shape: f32[8,32], index: 5, kind: output, shape index: {}]
  %s6 = sld [smem:[#allocation0]]
  $region34: #{tpu_custom_call.1} parent=0
    _
  %s8 = ssub.s32 1, %s6
  %s9 = scalar_select 0, %s8, %s6
  $region1: #{tpu_custom_call.1} parent=0
    #allocation2 [shape = 'u8[98304]{0}', space=vmem, size = 0x18000, scoped, tag = 'input window, operand 2, single buffered']
    #allocation3 [shape = 's32[1]{0}', space=sflag, size = 0x4, scoped, tag = 'scoped memory for tpu_custom_call.1']
    #allocation4 [shape = 's32[1]{0}', space=sflag, size = 0x4, scoped, tag = 'scoped memory for tpu_custom_call.1']
    #allocation5 [shape = 'u8[4096]{0}', space=vmem, size = 0x1000, scoped, tag = 'output window, operand 0, single buffered']
    %10 = vsyncpa [#allocation3], 0
    %11 = vsyncpa [#allocation4], 0
    // Predicated region
    $region2: #{tpu_custom_call.1} parent=1 // pred_check
      _
    $region3: #{tpu_custom_call.1} parent=1 // pred_check_branch
      %13 = sbr.rel (0) target = $region5
    $region4: #{tpu_custom_call.1} parent=1 // pred_region
      _
    $region5: #{tpu_custom_call.1} parent=1 // pred_fallthru
      _
    // Predicated region
    $region6: #{tpu_custom_call.1} parent=1 // pred_check
      _
    $region7: #{tpu_custom_call.1} parent=1 // pred_check_branch
      %15 = sbr.rel (0) target = $region9
    $region8: #{tpu_custom_call.1} parent=1 // pred_region
      _
    $region9: #{tpu_custom_call.1} parent=1 // pred_fallthru
      _
    // Predicated region
    $region10: #{tpu_custom_call.1} parent=1 // pred_check
      _
    $region11: #{tpu_custom_call.1} parent=1 // pred_check_branch
      %17 = sbr.rel (0) target = $region13
    $region12: #{tpu_custom_call.1} parent=1 // pred_region
      %s19 = ssub.s32 3072, 3072
      %20 = vsyncadd [#allocation3], %s19
      %s21 = sshll.u32 [#allocation2], 4
      %s22 = int_to_ptr.vmem [resolvable:$true] %s21
      %27 = dma.hbm_to_vmem [thread:$0]  %s2, 3072, %s22, [#allocation3], 64, 64, 4
    $region13: #{tpu_custom_call.1} parent=1 // pred_fallthru
      _
    // Predicated region
    $region14: #{tpu_custom_call.1} parent=1 // pred_check
      _
    $region15: #{tpu_custom_call.1} parent=1 // pred_check_branch
      %29 = sbr.rel (0) target = $region17
    $region16: #{tpu_custom_call.1} parent=1 // pred_region
      _
    $region17: #{tpu_custom_call.1} parent=1 // pred_fallthru
      _
    // Predicated region
    $region18: #{tpu_custom_call.1} parent=1 // pred_check
      _
    $region19: #{tpu_custom_call.1} parent=1 // pred_check_branch
      %31 = sbr.rel (0) target = $region21
    $region20: #{tpu_custom_call.1} parent=1 // pred_region
      _
    $region21: #{tpu_custom_call.1} parent=1 // pred_fallthru
      _
    // Predicated region
    $region22: #{tpu_custom_call.1} parent=1 // pred_check
      _
    $region23: #{tpu_custom_call.1} parent=1 // pred_check_branch
      %33 = sbr.rel (0) target = $region25
    $region24: #{tpu_custom_call.1} parent=1 // pred_region
      %34 = dma.done [#allocation3], 3072
    $region25: #{tpu_custom_call.1} parent=1 // pred_fallthru
      _
    %v36 = vld [vmem:[%s0] sm:$0xff]
    %v37 = vpack.c.bf16 %v36, %v36
    %v38 = vld [vmem:[%s1] sm:$0xf]
    %v39 = vld [vmem:[%s1 + $0x4] sm:$0xf]
    %v40 = vld [vmem:[%s4] sm:$0x1]
    %v41 = vlaneseq
    %v42 = vshrl.u32 %v41, 7
    %v43 = vsub.s32 0, %v42
    %v44 = vrot.slane %v40, %v43
    %v47 = vunpack.c.l.b16 %v38
    %v48 = vunpack.c.l.b16 %v39
    %v49 = vpack.c.b16 %v48, %v47
    %vm51 = vcmask 130048
    %v53 = vsel %vm51, %v37, 0
    %55 = vmatprep.subr.bf16.mxu0 0
    %56 = vmatpush1.bf16.msra.mxu0 %v49
    %57 = vmatprep.subr.bf16.mxu0 0
    %58 = vmatpush1.bf16.msra.mxu0 0
    %59 = vmatprep.subr.bf16.mxu0 0
    %60 = vmatpush1.bf16.msra.mxu0 0
    %61 = vmatprep.subr.bf16.mxu0 0
    %62 = vmatpush1.bf16.msra.mxu0 0
    %63 = vmatprep.subr.bf16.mxu0 0
    %64 = vmatpush1.bf16.msra.mxu0 0
    %65 = vmatprep.subr.bf16.mxu0 0
    %66 = vmatpush1.bf16.msra.mxu0 0
    %67 = vmatprep.subr.bf16.mxu0 0
    %68 = vmatpush1.bf16.msra.mxu0 0
    %69 = vmatprep.subr.bf16.mxu0 0
    %70 = vmatpush1.bf16.msra.mxu0 0
    %71 = vmatprep.subr.bf16.mxu0 0
    %72 = vmatpush1.bf16.msra.mxu0 0
    %73 = vmatprep.subr.bf16.mxu0 0
    %74 = vmatpush1.bf16.msra.mxu0 0
    %75 = vmatprep.subr.bf16.mxu0 0
    %76 = vmatpush1.bf16.msra.mxu0 0
    %77 = vmatprep.subr.bf16.mxu0 0
    %78 = vmatpush1.bf16.msra.mxu0 0
    %79 = vmatprep.subr.bf16.mxu0 0
    %80 = vmatpush1.bf16.msra.mxu0 0
    %81 = vmatprep.subr.bf16.mxu0 0
    %82 = vmatpush1.bf16.msra.mxu0 0
    %83 = vmatprep.subr.bf16.mxu0 0
    %84 = vmatpush1.bf16.msra.mxu0 0
    %85 = vmatprep.subr.bf16.mxu0 0
    %86 = vmatpush1.bf16.msra.mxu0 0
    %87 = vmatprep.mubr.bf16.mxu0 0
    %88 = vmatmul.mubr.bf16.gmra.mrb[0].mxu0 %v53
    %v89 = vpop.f32.mrb[0].mxu0
    %v90 = vadd.f32 %v44, %v89
    %v91 = vpop.f32.mrb[0].mxu0
    %v92 = vpop.f32.mrb[0].mxu0
    %v93 = vpop.f32.mrb[0].mxu0
    %94 = vdwg.mxu0
    %v95 = vmax.f32 %v90, 0.0
    %v96 = vpack.c.bf16 %v95, %v95
    %v97 = vld [vmem:[#allocation2] sm:$0xf]
    %v98 = vld [vmem:[#allocation2 + $0x4] sm:$0xf]
    %v99 = vld [vmem:[#allocation2 + $0x8] sm:$0xf]
    %v100 = vld [vmem:[#allocation2 + $0xc] sm:$0xf]
    %v101 = vld [vmem:[#allocation2 + $0x10] sm:$0xf]
    %v102 = vld [vmem:[#allocation2 + $0x14] sm:$0xf]
    %v103 = vld [vmem:[#allocation2 + $0x18] sm:$0xf]
    %v104 = vld [vmem:[#allocation2 + $0x1c] sm:$0xf]
    %v105 = vld [vmem:[#allocation2 + $0x20] sm:$0xf]
    %v106 = vld [vmem:[#allocation2 + $0x24] sm:$0xf]
    %v107 = vld [vmem:[#allocation2 + $0x28] sm:$0xf]
    %v108 = vld [vmem:[#allocation2 + $0x2c] sm:$0xf]
    %v109 = vld [vmem:[#allocation2 + $0x30] sm:$0xf]
    %v110 = vld [vmem:[#allocation2 + $0x34] sm:$0xf]
    %v111 = vld [vmem:[#allocation2 + $0x38] sm:$0xf]
    %v112 = vld [vmem:[#allocation2 + $0x3c] sm:$0xf]
    %v113 = vld [vmem:[%s4 + $0x1] sm:$0x1]
    %v114 = vlaneseq
    %v115 = vshrl.u32 %v114, 7
    %v116 = vsub.s32 0, %v115
    %v117 = vrot.slane %v113, %v116
    %v134 = vunpack.c.l.b16 %v97
    %v135 = vunpack.c.l.b16 %v98
    %v136 = vunpack.c.l.b16 %v99
    %v137 = vunpack.c.l.b16 %v100
    %v138 = vunpack.c.l.b16 %v101
    %v139 = vunpack.c.l.b16 %v102
    %v140 = vunpack.c.l.b16 %v103
    %v141 = vunpack.c.l.b16 %v104
    %v142 = vunpack.c.l.b16 %v105
    %v143 = vunpack.c.l.b16 %v106
    %v144 = vunpack.c.l.b16 %v107
    %v145 = vunpack.c.l.b16 %v108
    %v146 = vunpack.c.l.b16 %v109
    %v147 = vunpack.c.l.b16 %v110
    %v148 = vunpack.c.l.b16 %v111
    %v149 = vunpack.c.l.b16 %v112
    %v150 = vpack.c.b16 %v135, %v134
    %v151 = vpack.c.b16 %v137, %v136
    %v152 = vpack.c.b16 %v139, %v138
    %v153 = vpack.c.b16 %v141, %v140
    %v154 = vpack.c.b16 %v143, %v142
    %v155 = vpack.c.b16 %v145, %v144
    %v156 = vpack.c.b16 %v147, %v146
    %v157 = vpack.c.b16 %v149, %v148
    %166 = vmatprep.subr.bf16.mxu0 0
    %167 = vmatpush1.bf16.msra.mxu0 %v150
    %168 = vmatprep.subr.bf16.mxu0 0
    %169 = vmatpush1.bf16.msra.mxu0 %v151
    %170 = vmatprep.subr.bf16.mxu0 0
    %171 = vmatpush1.bf16.msra.mxu0 %v152
    %172 = vmatprep.subr.bf16.mxu0 0
    %173 = vmatpush1.bf16.msra.mxu0 %v153
    %174 = vmatprep.subr.bf16.mxu0 0
    %175 = vmatpush1.bf16.msra.mxu0 %v154
    %176 = vmatprep.subr.bf16.mxu0 0
    %177 = vmatpush1.bf16.msra.mxu0 %v155
    %178 = vmatprep.subr.bf16.mxu0 0
    %179 = vmatpush1.bf16.msra.mxu0 %v156
    %180 = vmatprep.subr.bf16.mxu0 0
    %181 = vmatpush1.bf16.msra.mxu0 %v157
    %182 = vmatprep.subr.bf16.mxu0 0
    %183 = vmatpush1.bf16.msra.mxu0 0
    %184 = vmatprep.subr.bf16.mxu0 0
    %185 = vmatpush1.bf16.msra.mxu0 0
    %186 = vmatprep.subr.bf16.mxu0 0
    %187 = vmatpush1.bf16.msra.mxu0 0
    %188 = vmatprep.subr.bf16.mxu0 0
    %189 = vmatpush1.bf16.msra.mxu0 0
    %190 = vmatprep.subr.bf16.mxu0 0
    %191 = vmatpush1.bf16.msra.mxu0 0
    %192 = vmatprep.subr.bf16.mxu0 0
    %193 = vmatpush1.bf16.msra.mxu0 0
    %194 = vmatprep.subr.bf16.mxu0 0
    %195 = vmatpush1.bf16.msra.mxu0 0
    %196 = vmatprep.subr.bf16.mxu0 0
    %197 = vmatpush1.bf16.msra.mxu0 0
    %198 = vmatprep.mubr.bf16.mxu0 0
    %199 = vmatmul.mubr.bf16.gmra.mrb[0].mxu0 %v96
    %v200 = vpop.f32.mrb[0].mxu0
    %v201 = vadd.f32 %v117, %v200
    %v202 = vpop.f32.mrb[0].mxu0
    %v203 = vpop.f32.mrb[0].mxu0
    %v204 = vpop.f32.mrb[0].mxu0
    %205 = vdwg.mxu0
    %v206 = vmax.f32 %v201, 0.0
    %v207 = vpack.c.bf16 %v206, %v206
    %s208 = scalar_lea.vmem [#allocation2], 64
    %v209 = vld [vmem:[%s208] sm:$0xf]
    %v210 = vld [vmem:[%s208 + $0x4] sm:$0xf]
    %v211 = vld [vmem:[%s208 + $0x8] sm:$0xf]
    %v212 = vld [vmem:[%s208 + $0xc] sm:$0xf]
    %v213 = vld [vmem:[%s208 + $0x10] sm:$0xf]
    %v214 = vld [vmem:[%s208 + $0x14] sm:$0xf]
    %v215 = vld [vmem:[%s208 + $0x18] sm:$0xf]
    %v216 = vld [vmem:[%s208 + $0x1c] sm:$0xf]
    %v217 = vld [vmem:[%s208 + $0x20] sm:$0xf]
    %v218 = vld [vmem:[%s208 + $0x24] sm:$0xf]
    %v219 = vld [vmem:[%s208 + $0x28] sm:$0xf]
    %v220 = vld [vmem:[%s208 + $0x2c] sm:$0xf]
    %v221 = vld [vmem:[%s208 + $0x30] sm:$0xf]
    %v222 = vld [vmem:[%s208 + $0x34] sm:$0xf]
    %v223 = vld [vmem:[%s208 + $0x38] sm:$0xf]
    %v224 = vld [vmem:[%s208 + $0x3c] sm:$0xf]
    %v225 = vld [vmem:[%s4 + $0x2] sm:$0x1]
    %v226 = vlaneseq
    %v227 = vshrl.u32 %v226, 7
    %v228 = vsub.s32 0, %v227
    %v229 = vrot.slane %v225, %v228
    %v246 = vunpack.c.l.b16 %v209
    %v247 = vunpack.c.l.b16 %v210
    %v248 = vunpack.c.l.b16 %v211
    %v249 = vunpack.c.l.b16 %v212
    %v250 = vunpack.c.l.b16 %v213
    %v251 = vunpack.c.l.b16 %v214
    %v252 = vunpack.c.l.b16 %v215
    %v253 = vunpack.c.l.b16 %v216
    %v254 = vunpack.c.l.b16 %v217
    %v255 = vunpack.c.l.b16 %v218
    %v256 = vunpack.c.l.b16 %v219
    %v257 = vunpack.c.l.b16 %v220
    %v258 = vunpack.c.l.b16 %v221
    %v259 = vunpack.c.l.b16 %v222
    %v260 = vunpack.c.l.b16 %v223
    %v261 = vunpack.c.l.b16 %v224
    %v262 = vpack.c.b16 %v247, %v246
    %v263 = vpack.c.b16 %v249, %v248
    %v264 = vpack.c.b16 %v251, %v250
    %v265 = vpack.c.b16 %v253, %v252
    %v266 = vpack.c.b16 %v255, %v254
    %v267 = vpack.c.b16 %v257, %v256
    %v268 = vpack.c.b16 %v259, %v258
    %v269 = vpack.c.b16 %v261, %v260
    %278 = vmatprep.subr.bf16.mxu0 0
    %279 = vmatpush1.bf16.msra.mxu0 %v262
    %280 = vmatprep.subr.bf16.mxu0 0
    %281 = vmatpush1.bf16.msra.mxu0 %v263
    %282 = vmatprep.subr.bf16.mxu0 0
    %283 = vmatpush1.bf16.msra.mxu0 %v264
    %284 = vmatprep.subr.bf16.mxu0 0
    %285 = vmatpush1.bf16.msra.mxu0 %v265
    %286 = vmatprep.subr.bf16.mxu0 0
    %287 = vmatpush1.bf16.msra.mxu0 %v266
    %288 = vmatprep.subr.bf16.mxu0 0
    %289 = vmatpush1.bf16.msra.mxu0 %v267
    %290 = vmatprep.subr.bf16.mxu0 0
    %291 = vmatpush1.bf16.msra.mxu0 %v268
    %292 = vmatprep.subr.bf16.mxu0 0
    %293 = vmatpush1.bf16.msra.mxu0 %v269
    %294 = vmatprep.subr.bf16.mxu0 0
    %295 = vmatpush1.bf16.msra.mxu0 0
    %296 = vmatprep.subr.bf16.mxu0 0
    %297 = vmatpush1.bf16.msra.mxu0 0
    %298 = vmatprep.subr.bf16.mxu0 0
    %299 = vmatpush1.bf16.msra.mxu0 0
    %300 = vmatprep.subr.bf16.mxu0 0
    %301 = vmatpush1.bf16.msra.mxu0 0
    %302 = vmatprep.subr.bf16.mxu0 0
    %303 = vmatpush1.bf16.msra.mxu0 0
    %304 = vmatprep.subr.bf16.mxu0 0
    %305 = vmatpush1.bf16.msra.mxu0 0
    %306 = vmatprep.subr.bf16.mxu0 0
    %307 = vmatpush1.bf16.msra.mxu0 0
    %308 = vmatprep.subr.bf16.mxu0 0
    %309 = vmatpush1.bf16.msra.mxu0 0
    %310 = vmatprep.mubr.bf16.mxu0 0
    %311 = vmatmul.mubr.bf16.gmra.mrb[0].mxu0 %v207
    %v312 = vpop.f32.mrb[0].mxu0
    %v313 = vadd.f32 %v229, %v312
    %v314 = vpop.f32.mrb[0].mxu0
    %v315 = vpop.f32.mrb[0].mxu0
    %v316 = vpop.f32.mrb[0].mxu0
    %317 = vdwg.mxu0
    %v318 = vmax.f32 %v313, 0.0
    %v319 = vpack.c.bf16 %v318, %v318
    %s320 = scalar_lea.vmem [#allocation2], 128
    %v321 = vld [vmem:[%s320] sm:$0xf]
    %v322 = vld [vmem:[%s320 + $0x4] sm:$0xf]
    %v323 = vld [vmem:[%s320 + $0x8] sm:$0xf]
    %v324 = vld [vmem:[%s320 + $0xc] sm:$0xf]
    %v325 = vld [vmem:[%s320 + $0x10] sm:$0xf]
    %v326 = vld [vmem:[%s320 + $0x14] sm:$0xf]
    %v327 = vld [vmem:[%s320 + $0x18] sm:$0xf]
    %v328 = vld [vmem:[%s320 + $0x1c] sm:$0xf]
    %v329 = vld [vmem:[%s320 + $0x20] sm:$0xf]
    %v330 = vld [vmem:[%s320 + $0x24] sm:$0xf]
    %v331 = vld [vmem:[%s320 + $0x28] sm:$0xf]
    %v332 = vld [vmem:[%s320 + $0x2c] sm:$0xf]
    %v333 = vld [vmem:[%s320 + $0x30] sm:$0xf]
    %v334 = vld [vmem:[%s320 + $0x34] sm:$0xf]
    %v335 = vld [vmem:[%s320 + $0x38] sm:$0xf]
    %v336 = vld [vmem:[%s320 + $0x3c] sm:$0xf]
    %v337 = vld [vmem:[%s4 + $0x3] sm:$0x1]
    %v338 = vlaneseq
    %v339 = vshrl.u32 %v338, 7
    %v340 = vsub.s32 0, %v339
    %v341 = vrot.slane %v337, %v340
    %v358 = vunpack.c.l.b16 %v321
    %v359 = vunpack.c.l.b16 %v322
    %v360 = vunpack.c.l.b16 %v323
    %v361 = vunpack.c.l.b16 %v324
    %v362 = vunpack.c.l.b16 %v325
    %v363 = vunpack.c.l.b16 %v326
    %v364 = vunpack.c.l.b16 %v327
    %v365 = vunpack.c.l.b16 %v328
    %v366 = vunpack.c.l.b16 %v329
    %v367 = vunpack.c.l.b16 %v330
    %v368 = vunpack.c.l.b16 %v331
    %v369 = vunpack.c.l.b16 %v332
    %v370 = vunpack.c.l.b16 %v333
    %v371 = vunpack.c.l.b16 %v334
    %v372 = vunpack.c.l.b16 %v335
    %v373 = vunpack.c.l.b16 %v336
    %v374 = vpack.c.b16 %v359, %v358
    %v375 = vpack.c.b16 %v361, %v360
    %v376 = vpack.c.b16 %v363, %v362
    %v377 = vpack.c.b16 %v365, %v364
    %v378 = vpack.c.b16 %v367, %v366
    %v379 = vpack.c.b16 %v369, %v368
    %v380 = vpack.c.b16 %v371, %v370
    %v381 = vpack.c.b16 %v373, %v372
    %390 = vmatprep.subr.bf16.mxu0 0
    %391 = vmatpush1.bf16.msra.mxu0 %v374
    %392 = vmatprep.subr.bf16.mxu0 0
    %393 = vmatpush1.bf16.msra.mxu0 %v375
    %394 = vmatprep.subr.bf16.mxu0 0
    %395 = vmatpush1.bf16.msra.mxu0 %v376
    %396 = vmatprep.subr.bf16.mxu0 0
    %397 = vmatpush1.bf16.msra.mxu0 %v377
    %398 = vmatprep.subr.bf16.mxu0 0
    %399 = vmatpush1.bf16.msra.mxu0 %v378
    %400 = vmatprep.subr.bf16.mxu0 0
    %401 = vmatpush1.bf16.msra.mxu0 %v379
    %402 = vmatprep.subr.bf16.mxu0 0
    %403 = vmatpush1.bf16.msra.mxu0 %v380
    %404 = vmatprep.subr.bf16.mxu0 0
    %405 = vmatpush1.bf16.msra.mxu0 %v381
    %406 = vmatprep.subr.bf16.mxu0 0
    %407 = vmatpush1.bf16.msra.mxu0 0
    %408 = vmatprep.subr.bf16.mxu0 0
    %409 = vmatpush1.bf16.msra.mxu0 0
    %410 = vmatprep.subr.bf16.mxu0 0
    %411 = vmatpush1.bf16.msra.mxu0 0
    %412 = vmatprep.subr.bf16.mxu0 0
    %413 = vmatpush1.bf16.msra.mxu0 0
    %414 = vmatprep.subr.bf16.mxu0 0
    %415 = vmatpush1.bf16.msra.mxu0 0
    %416 = vmatprep.subr.bf16.mxu0 0
    %417 = vmatpush1.bf16.msra.mxu0 0
    %418 = vmatprep.subr.bf16.mxu0 0
    %419 = vmatpush1.bf16.msra.mxu0 0
    %420 = vmatprep.subr.bf16.mxu0 0
    %421 = vmatpush1.bf16.msra.mxu0 0
    %422 = vmatprep.mubr.bf16.mxu0 0
    %423 = vmatmul.mubr.bf16.gmra.mrb[0].mxu0 %v319
    %v424 = vpop.f32.mrb[0].mxu0
    %v425 = vadd.f32 %v341, %v424
    %v426 = vpop.f32.mrb[0].mxu0
    %v427 = vpop.f32.mrb[0].mxu0
    %v428 = vpop.f32.mrb[0].mxu0
    %429 = vdwg.mxu0
    %v430 = vmax.f32 %v425, 0.0
    %v431 = vpack.c.bf16 %v430, %v430
    %v432 = vld [vmem:[%s3] sm:$0xf]
    %v433 = vld [vmem:[%s3 + $0x4] sm:$0xf]
    %v434 = vld [vmem:[%s3 + $0x8] sm:$0xf]
    %v435 = vld [vmem:[%s3 + $0xc] sm:$0xf]
    %v436 = vld [vmem:[%s3 + $0x10] sm:$0xf]
    %v437 = vld [vmem:[%s3 + $0x14] sm:$0xf]
    %v438 = vld [vmem:[%s3 + $0x18] sm:$0xf]
    %v439 = vld [vmem:[%s3 + $0x1c] sm:$0xf]
    %v440 = vld [vmem:[%s3 + $0x20] sm:$0xf]
    %v441 = vld [vmem:[%s3 + $0x24] sm:$0xf]
    %v442 = vld [vmem:[%s3 + $0x28] sm:$0xf]
    %v443 = vld [vmem:[%s3 + $0x2c] sm:$0xf]
    %v444 = vld [vmem:[%s3 + $0x30] sm:$0xf]
    %v445 = vld [vmem:[%s3 + $0x34] sm:$0xf]
    %v446 = vld [vmem:[%s3 + $0x38] sm:$0xf]
    %v447 = vld [vmem:[%s3 + $0x3c] sm:$0xf]
    %v448 = vld [vmem:[%s4 + $0x4] sm:$0x1]
    %v449 = vlaneseq
    %v450 = vshrl.u32 %v449, 7
    %v451 = vsub.s32 0, %v450
    %v452 = vrot.slane %v448, %v451
    %v469 = vunpack.c.l.b16 %v432
    %v470 = vunpack.c.l.b16 %v433
    %v471 = vunpack.c.l.b16 %v434
    %v472 = vunpack.c.l.b16 %v435
    %v473 = vunpack.c.l.b16 %v436
    %v474 = vunpack.c.l.b16 %v437
    %v475 = vunpack.c.l.b16 %v438
    %v476 = vunpack.c.l.b16 %v439
    %v477 = vunpack.c.l.b16 %v440
    %v478 = vunpack.c.l.b16 %v441
    %v479 = vunpack.c.l.b16 %v442
    %v480 = vunpack.c.l.b16 %v443
    %v481 = vunpack.c.l.b16 %v444
    %v482 = vunpack.c.l.b16 %v445
    %v483 = vunpack.c.l.b16 %v446
    %v484 = vunpack.c.l.b16 %v447
    %v485 = vpack.c.b16 %v470, %v469
    %v486 = vpack.c.b16 %v472, %v471
    %v487 = vpack.c.b16 %v474, %v473
    %v488 = vpack.c.b16 %v476, %v475
    %v489 = vpack.c.b16 %v478, %v477
    %v490 = vpack.c.b16 %v480, %v479
    %v491 = vpack.c.b16 %v482, %v481
    %v492 = vpack.c.b16 %v484, %v483
    %501 = vmatprep.subr.bf16.mxu0 0
    %502 = vmatpush1.bf16.msra.mxu0 %v485
    %503 = vmatprep.subr.bf16.mxu0 0
    %504 = vmatpush1.bf16.msra.mxu0 %v486
    %505 = vmatprep.subr.bf16.mxu0 0
    %506 = vmatpush1.bf16.msra.mxu0 %v487
    %507 = vmatprep.subr.bf16.mxu0 0
    %508 = vmatpush1.bf16.msra.mxu0 %v488
    %509 = vmatprep.subr.bf16.mxu0 0
    %510 = vmatpush1.bf16.msra.mxu0 %v489
    %511 = vmatprep.subr.bf16.mxu0 0
    %512 = vmatpush1.bf16.msra.mxu0 %v490
    %513 = vmatprep.subr.bf16.mxu0 0
    %514 = vmatpush1.bf16.msra.mxu0 %v491
    %515 = vmatprep.subr.bf16.mxu0 0
    %516 = vmatpush1.bf16.msra.mxu0 %v492
    %517 = vmatprep.subr.bf16.mxu0 0
    %518 = vmatpush1.bf16.msra.mxu0 0
    %519 = vmatprep.subr.bf16.mxu0 0
    %520 = vmatpush1.bf16.msra.mxu0 0
    %521 = vmatprep.subr.bf16.mxu0 0
    %522 = vmatpush1.bf16.msra.mxu0 0
    %523 = vmatprep.subr.bf16.mxu0 0
    %524 = vmatpush1.bf16.msra.mxu0 0
    %525 = vmatprep.subr.bf16.mxu0 0
    %526 = vmatpush1.bf16.msra.mxu0 0
    %527 = vmatprep.subr.bf16.mxu0 0
    %528 = vmatpush1.bf16.msra.mxu0 0
    %529 = vmatprep.subr.bf16.mxu0 0
    %530 = vmatpush1.bf16.msra.mxu0 0
    %531 = vmatprep.subr.bf16.mxu0 0
    %532 = vmatpush1.bf16.msra.mxu0 0
    %533 = vmatprep.mubr.bf16.mxu0 0
    %534 = vmatmul.mubr.bf16.gmra.mrb[0].mxu0 %v431
    %v535 = vpop.f32.mrb[0].mxu0
    %v536 = vadd.f32 %v452, %v535
    %v537 = vpop.f32.mrb[0].mxu0
    %v538 = vpop.f32.mrb[0].mxu0
    %v539 = vpop.f32.mrb[0].mxu0
    %540 = vdwg.mxu0
    %v541 = vmax.f32 %v536, 0.0
    %vm542 = vcmask 261120
    %543 = vst.msk [vmem:[#allocation5] sm:$0xff] %vm542, %v541
    // Predicated region
    $region26: #{tpu_custom_call.1} parent=1 // pred_check
      _
    $region27: #{tpu_custom_call.1} parent=1 // pred_check_branch
      %545 = sbr.rel (0) target = $region29
    $region28: #{tpu_custom_call.1} parent=1 // pred_region
      %s547 = ssub.s32 128, 128
      %548 = vsyncadd [#allocation4], %s547
      %s550 = sshll.u32 [#allocation5], 4
      %s551 = int_to_ptr.vmem [resolvable:$true] %s550
      %553 = dma.vmem_to_hbm [thread:$0]  %s551, 128, %s5, [#allocation4]
    $region29: #{tpu_custom_call.1} parent=1 // pred_fallthru
      _
    // Predicated region
    $region30: #{tpu_custom_call.1} parent=1 // pred_check
      _
    $region31: #{tpu_custom_call.1} parent=1 // pred_check_branch
      %555 = sbr.rel (0) target = $region33
    $region32: #{tpu_custom_call.1} parent=1 // pred_region
      %556 = dma.done [#allocation4], 128
    $region33: #{tpu_custom_call.1} parent=1 // pred_fallthru
      _
    %557 = vsyncpa [#allocation3], 1
    %558 = vsyncpa [#allocation4], 1

</llo_original>
